<compile_context>
chip_gen: v6e
topology: v6e:2x2x1
jax: 0.10.0
libtpu: 0.0.40
codegen_flags: <defaults>
</compile_context>

<pallas_src>
import math

import jax
import jax.numpy as jnp
from jax.experimental import pallas as pl
from jax.experimental.pallas import tpu as pltpu

BN_EPS = 1e-5
LANE_PAD = 128


def _gaussian_kernel(x_ref, w1_ref, w23_ref, wmd_ref, wvd_ref, ww_ref,
                     va_ref, vb_ref, vm_ref, out_ref):
    B = x_ref.shape[0]
    H = w1_ref.shape[1]
    inv_b = 1.0 / B
    bf16 = jnp.bfloat16

    def bn(z, gamma, beta):
        # Training-mode BatchNorm1d (batch mean, biased batch variance), two-pass
        # form (matches the reference; avoids one-pass cancellation). f32 math.
        mu = jnp.sum(z, axis=0, keepdims=True) * inv_b
        d = z - mu
        var = jnp.sum(d * d, axis=0, keepdims=True) * inv_b
        return d * (gamma * jax.lax.rsqrt(var + BN_EPS)) + beta

    va = va_ref[...]   # (5, H) : b1, g1, be1, g4[2H:], be4[2H:]
    vb = vb_ref[...]   # (5, 2H): [b2|b3], [g2|g3], [be2|be3], g4[:2H], be4[:2H]
    vm = vm_ref[...]   # (3, MP): bmd_pad, bvd_pad, bw_pad (-1e30 in padded lanes)

    # h = relu(bn1(fc(x)))
    h = jnp.dot(x_ref[...].astype(bf16), w1_ref[...],
                preferred_element_type=jnp.float32) + va[0:1, :]
    h = jnp.maximum(bn(h, va[1:2, :], va[2:3, :]), 0.0)            # (B, H) f32
    h16 = h.astype(bf16)

    # Fused encoders: t = h @ [w2 | w3] + [b2 | b3]  -> enc = [mh | vh]
    t = jnp.dot(h16, w23_ref[...], preferred_element_type=jnp.float32) + vb[0:1, :]
    enc = jnp.maximum(bn(t, vb[1:2, :], vb[2:3, :]), 0.0)          # (B, 2H) f32
    enc16 = enc.astype(bf16)

    # Decoders: two dense (H, MP) matmuls on the mh / vh halves (no zero blocks).
    mean = jnp.dot(enc16[:, :H], wmd_ref[...],
                   preferred_element_type=jnp.float32) + vm[0:1, :]
    var_pre = jnp.dot(enc16[:, H:], wvd_ref[...],
                      preferred_element_type=jnp.float32) + vm[1:2, :]
    out_ref[0] = mean                         # mean_decoder(mean)   (lane-padded)
    out_ref[1] = jnp.exp(var_pre + 1e-6)      # exp(var_decoder(var) + 1e-6)

    # bn4(cat([mh, vh, h])) + weight() without materializing the concat:
    # split both the BN and the weight matmul over the [enc | h] halves.
    y_a = bn(enc, vb[3:4, :], vb[4:5, :]).astype(bf16)             # (B, 2H)
    y_b = bn(h, va[3:4, :], va[4:5, :]).astype(bf16)               # (B, H)
    logits = (jnp.dot(y_a, ww_ref[:2 * H, :], preferred_element_type=jnp.float32)
              + jnp.dot(y_b, ww_ref[2 * H:, :], preferred_element_type=jnp.float32)
              + vm[2:3, :])                   # padded lanes get -1e30 -> softmax 0
    # (+1e-6 on the logits is a uniform shift -> no-op for softmax.)
    mx = jnp.max(logits, axis=1, keepdims=True)
    e = jnp.exp(logits - mx)
    denom = jnp.sum(e, axis=1, keepdims=True)
    # Exact reciprocal so mixture weights sum to 1 (review correctness concern).
    out_ref[2] = e * pl.reciprocal(denom, approx=False)


def _vmem_limit_bytes(B, input_size, H, MP):
    weight_bytes = 2 * (input_size * H + H * 2 * H + 2 * H * MP + 3 * H * MP)  # bf16
    vec_bytes = 4 * (5 * H + 5 * 2 * H + 3 * MP)
    act_bytes = 4 * B * (input_size + 4 * H + 3 * H + 3 * MP) * 2              # f32 temps
    out_bytes = 4 * 3 * B * MP
    need = 2 * (weight_bytes + vec_bytes + act_bytes + out_bytes) + (4 << 20)
    return int(min(max(need, 32 << 20), 100 << 20))


def gaussian_forward(x, packed, mixture_num):
    B, input_size = x.shape
    H = packed["w1"].shape[1]
    MP = packed["wmd"].shape[1]

    vmem = pl.BlockSpec(memory_space=pltpu.MemorySpace.VMEM)
    flops = 2 * B * (input_size * H + 2 * H * H + 5 * H * MP)
    bytes_accessed = int(
        x.size * x.dtype.itemsize
        + sum(int(v.size) * v.dtype.itemsize for v in packed.values())
        + 3 * B * MP * 4)
    cost = pl.CostEstimate(flops=int(flops),
                           transcendentals=int(2 * B * MP + 6 * H),
                           bytes_accessed=bytes_accessed)

    out = pl.pallas_call(
        _gaussian_kernel,
        out_shape=jax.ShapeDtypeStruct((3, B, MP), jnp.float32),
        in_specs=[vmem] * 9,
        out_specs=vmem,
        compiler_params=pltpu.CompilerParams(
            vmem_limit_bytes=_vmem_limit_bytes(B, input_size, H, MP)),
        cost_estimate=cost,
    )(x, packed["w1"], packed["w23"], packed["wmd"], packed["wvd"],
      packed["ww"], packed["va"], packed["vb"], packed["vm"])

    m = out[0, :, :mixture_num]
    v = out[1, :, :mixture_num]
    gw = out[2, :, :mixture_num]
    return m, v, gw


def init_params(key, input_size, hidden_size, mixture_num):
    H, M = hidden_size, mixture_num

    def linear(key, fan_in, fan_out):
        kw, kb = jax.random.split(key)
        bound = 1.0 / math.sqrt(fan_in)
        w = jax.random.uniform(kw, (fan_in, fan_out), jnp.float32, -bound, bound)
        b = jax.random.uniform(kb, (1, fan_out), jnp.float32, -bound, bound)
        return w, b

    ks = jax.random.split(key, 6)
    w1, b1 = linear(ks[0], input_size, H)     # fc
    w2, b2 = linear(ks[1], H, H)              # mean_encoder
    w3, b3 = linear(ks[2], H, H)              # var_encoder
    wmd, bmd = linear(ks[3], H, M)            # mean_decoder
    wvd, bvd = linear(ks[4], H, M)            # var_decoder
    ww, bw = linear(ks[5], 3 * H, M)          # weight

    ones = lambda n: jnp.ones((1, n), jnp.float32)
    zeros = lambda n: jnp.zeros((1, n), jnp.float32)
    return {
        "w1": w1, "b1": b1, "g1": ones(H), "be1": zeros(H),
        "w2": w2, "b2": b2, "g2": ones(H), "be2": zeros(H),
        "w3": w3, "b3": b3, "g3": ones(H), "be3": zeros(H),
        "wmd": wmd, "bmd": bmd, "wvd": wvd, "bvd": bvd,
        "g4": ones(3 * H), "be4": zeros(3 * H),
        "ww": ww, "bw": bw,
    }


def pack_params(p, hidden_size, mixture_num, lane_pad=LANE_PAD):
    """Host-side consolidation: fuse encoder weights, lane-pad all M-sized
    tensors to MP=128, pack the small per-feature vectors, cast weights to bf16."""
    H, M = hidden_size, mixture_num
    MP = ((M + lane_pad - 1) // lane_pad) * lane_pad
    f32, bf16 = jnp.float32, jnp.bfloat16

    w23 = jnp.concatenate([p["w2"], p["w3"]], axis=1)                 # (H, 2H)

    def pad_cols(w, fill=0.0):
        out = jnp.full((w.shape[0], MP), fill, f32)
        return out.at[:, :w.shape[1]].set(w)

    wmd_p = pad_cols(p["wmd"])                                        # (H, MP)
    wvd_p = pad_cols(p["wvd"])                                        # (H, MP)
    ww_p = pad_cols(p["ww"])                                          # (3H, MP)

    va = jnp.concatenate(
        [p["b1"], p["g1"], p["be1"], p["g4"][:, 2 * H:], p["be4"][:, 2 * H:]],
        axis=0)                                                       # (5, H)
    vb = jnp.concatenate(
        [jnp.concatenate([p["b2"], p["b3"]], axis=1),
         jnp.concatenate([p["g2"], p["g3"]], axis=1),
         jnp.concatenate([p["be2"], p["be3"]], axis=1),
         p["g4"][:, :2 * H], p["be4"][:, :2 * H]],
        axis=0)                                                       # (5, 2H)
    # weight() bias padded with -1e30 so the padded softmax lanes contribute 0.
    vm = jnp.concatenate(
        [pad_cols(p["bmd"]), pad_cols(p["bvd"]), pad_cols(p["bw"], fill=-1e30)],
        axis=0)                                                       # (3, MP)

    return {"w1": p["w1"].astype(bf16), "w23": w23.astype(bf16),
            "wmd": wmd_p.astype(bf16), "wvd": wvd_p.astype(bf16),
            "ww": ww_p.astype(bf16),
            "va": va, "vb": vb, "vm": vm}


def reference_forward(x, p, matmul_dtype=jnp.float32):
    """Plain-JAX mirror of the PyTorch module. With matmul_dtype=bfloat16 the
    matmul operands are rounded exactly like the kernel's (f32 accumulation),
    so it serves as a precision-matched correctness reference."""
    def mm(a, w):
        return jnp.dot(a.astype(matmul_dtype), w.astype(matmul_dtype),
                       preferred_element_type=jnp.float32)

    def bn(z, g, b):
        mu = jnp.mean(z, axis=0, keepdims=True)
        v = jnp.mean((z - mu) ** 2, axis=0, keepdims=True)
        return (z - mu) / jnp.sqrt(v + BN_EPS) * g + b

    h = jnp.maximum(bn(mm(x, p["w1"]) + p["b1"], p["g1"], p["be1"]), 0.0)
    mh = jnp.maximum(bn(mm(h, p["w2"]) + p["b2"], p["g2"], p["be2"]), 0.0)
    vh = jnp.maximum(bn(mm(h, p["w3"]) + p["b3"], p["g3"], p["be3"]), 0.0)
    y = bn(jnp.concatenate([mh, vh, h], axis=1), p["g4"], p["be4"])
    gw = jax.nn.softmax(mm(y, p["ww"]) + p["bw"] + 1e-6, axis=1)
    mean = mm(mh, p["wmd"]) + p["bmd"]
    var = jnp.exp(mm(vh, p["wvd"]) + p["bvd"] + 1e-6)
    return mean, var, gw


if __name__ == "__main__":
    B, INPUT_SIZE, HIDDEN, MIXTURE = 8, 16, 32, 3

    key = jax.random.PRNGKey(0)
    k_x, k_p = jax.random.split(key)
    x = jax.random.normal(k_x, (B, INPUT_SIZE), jnp.float32)
    params = init_params(k_p, INPUT_SIZE, HIDDEN, MIXTURE)
    packed = pack_params(params, HIDDEN, MIXTURE)

    mean, var, gw = gaussian_forward(x, packed, MIXTURE)
    jax.block_until_ready((mean, var, gw))

    # Precision-matched reference (bf16 matmul operands, f32 elementwise), since
    # the kernel runs its matmuls in bf16; bf16 operand rounding sets a ~4e-3
    # relative noise floor vs. a pure-f32 computation.
    mean_r, var_r, gw_r = reference_forward(x, params, matmul_dtype=jnp.bfloat16)

    assert mean.shape == (B, MIXTURE) and var.shape == (B, MIXTURE) and gw.shape == (B, MIXTURE)
    assert jnp.allclose(mean, mean_r, atol=1e-2, rtol=1e-2)
    assert jnp.allclose(var, var_r, atol=1e-2, rtol=1e-2)
    assert jnp.allclose(gw, gw_r, atol=1e-2, rtol=1e-2)
    # Exact-reciprocal softmax: mixture weights are properly normalized.
    assert jnp.allclose(jnp.sum(gw, axis=1), 1.0, atol=1e-4)

    print("KERNEL_OK")
</pallas_src>

<mosaic_0001>
module attributes {stable_mosaic.version = 11 : i64} {
  func.func @_gaussian_kernel(%arg0: memref<8x16xf32, #tpu.memory_space<vmem>>, %arg1: memref<16x32xbf16, #tpu.memory_space<vmem>>, %arg2: memref<32x64xbf16, #tpu.memory_space<vmem>>, %arg3: memref<32x128xbf16, #tpu.memory_space<vmem>>, %arg4: memref<32x128xbf16, #tpu.memory_space<vmem>>, %arg5: memref<96x128xbf16, #tpu.memory_space<vmem>>, %arg6: memref<5x32xf32, #tpu.memory_space<vmem>>, %arg7: memref<5x64xf32, #tpu.memory_space<vmem>>, %arg8: memref<3x128xf32, #tpu.memory_space<vmem>>, %arg9: memref<3x8x128xf32, #tpu.memory_space<vmem>>) attributes {dimension_semantics = [], scalar_prefetch = 0 : i64, scratch_operands = 0 : i64, tpu.core_type = #tpu.core_type<tc>} {
    %c0 = arith.constant 0 : index
    %c0_0 = arith.constant 0 : index
    %0 = vector.load %arg6[%c0, %c0_0] : memref<5x32xf32, #tpu.memory_space<vmem>>, vector<5x32xf32>
    %c0_1 = arith.constant 0 : index
    %c0_2 = arith.constant 0 : index
    %1 = vector.load %arg7[%c0_1, %c0_2] : memref<5x64xf32, #tpu.memory_space<vmem>>, vector<5x64xf32>
    %c0_3 = arith.constant 0 : index
    %c0_4 = arith.constant 0 : index
    %2 = vector.load %arg8[%c0_3, %c0_4] : memref<3x128xf32, #tpu.memory_space<vmem>>, vector<3x128xf32>
    %c0_5 = arith.constant 0 : index
    %c0_6 = arith.constant 0 : index
    %3 = vector.load %arg0[%c0_5, %c0_6] : memref<8x16xf32, #tpu.memory_space<vmem>>, vector<8x16xf32>
    %4 = arith.truncf %3 : vector<8x16xf32> to vector<8x16xbf16>
    %c0_7 = arith.constant 0 : index
    %c0_8 = arith.constant 0 : index
    %5 = vector.load %arg1[%c0_7, %c0_8] : memref<16x32xbf16, #tpu.memory_space<vmem>>, vector<16x32xbf16>
    %cst = arith.constant dense<0.000000e+00> : vector<8x32xf32>
    %6 = tpu.matmul %4, %5, %cst {dimension_numbers = #tpu.dot_dimension_numbers<[1], [0], [0], [1], [0, 0, 1, 1], [], []>} : vector<8x16xbf16>, vector<16x32xbf16>, vector<8x32xf32> -> vector<8x32xf32>
    %7 = vector.extract_strided_slice %0 {offsets = [0, 0], sizes = [1, 32], strides = [1, 1]} : vector<5x32xf32> to vector<1x32xf32>
    %8 = vector.broadcast %7 : vector<1x32xf32> to vector<8x32xf32>
    %9 = arith.addf %6, %8 : vector<8x32xf32>
    %10 = vector.extract_strided_slice %0 {offsets = [1, 0], sizes = [1, 32], strides = [1, 1]} : vector<5x32xf32> to vector<1x32xf32>
    %11 = vector.extract_strided_slice %0 {offsets = [2, 0], sizes = [1, 32], strides = [1, 1]} : vector<5x32xf32> to vector<1x32xf32>
    %cst_9 = arith.constant dense<0.000000e+00> : vector<32xf32>
    %12 = vector.multi_reduction <add>, %9, %cst_9 [0] : vector<8x32xf32> to vector<32xf32>
    %13 = vector.shape_cast %12 : vector<32xf32> to vector<1x32xf32>
    %cst_10 = arith.constant 1.250000e-01 : f32
    %14 = vector.broadcast %cst_10 : f32 to vector<1x32xf32>
    %15 = arith.mulf %13, %14 : vector<1x32xf32>
    %16 = vector.broadcast %15 : vector<1x32xf32> to vector<8x32xf32>
    %17 = arith.subf %9, %16 : vector<8x32xf32>
    %18 = arith.mulf %17, %17 : vector<8x32xf32>
    %cst_11 = arith.constant dense<0.000000e+00> : vector<32xf32>
    %19 = vector.multi_reduction <add>, %18, %cst_11 [0] : vector<8x32xf32> to vector<32xf32>
    %20 = vector.shape_cast %19 : vector<32xf32> to vector<1x32xf32>
    %cst_12 = arith.constant 1.250000e-01 : f32
    %21 = vector.broadcast %cst_12 : f32 to vector<1x32xf32>
    %22 = arith.mulf %20, %21 : vector<1x32xf32>
    %cst_13 = arith.constant 9.99999974E-6 : f32
    %23 = vector.broadcast %cst_13 : f32 to vector<1x32xf32>
    %24 = arith.addf %22, %23 : vector<1x32xf32>
    %25 = math.rsqrt %24 : vector<1x32xf32>
    %26 = arith.mulf %10, %25 : vector<1x32xf32>
    %27 = vector.broadcast %26 : vector<1x32xf32> to vector<8x32xf32>
    %28 = arith.mulf %17, %27 : vector<8x32xf32>
    %29 = vector.broadcast %11 : vector<1x32xf32> to vector<8x32xf32>
    %30 = arith.addf %28, %29 : vector<8x32xf32>
    %cst_14 = arith.constant 0.000000e+00 : f32
    %31 = vector.broadcast %cst_14 : f32 to vector<8x32xf32>
    %32 = arith.maximumf %30, %31 : vector<8x32xf32>
    %33 = arith.truncf %32 : vector<8x32xf32> to vector<8x32xbf16>
    %c0_15 = arith.constant 0 : index
    %c0_16 = arith.constant 0 : index
    %34 = vector.load %arg2[%c0_15, %c0_16] : memref<32x64xbf16, #tpu.memory_space<vmem>>, vector<32x64xbf16>
    %cst_17 = arith.constant dense<0.000000e+00> : vector<8x64xf32>
    %35 = tpu.matmul %33, %34, %cst_17 {dimension_numbers = #tpu.dot_dimension_numbers<[1], [0], [0], [1], [0, 0, 1, 1], [], []>} : vector<8x32xbf16>, vector<32x64xbf16>, vector<8x64xf32> -> vector<8x64xf32>
    %36 = vector.extract_strided_slice %1 {offsets = [0, 0], sizes = [1, 64], strides = [1, 1]} : vector<5x64xf32> to vector<1x64xf32>
    %37 = vector.broadcast %36 : vector<1x64xf32> to vector<8x64xf32>
    %38 = arith.addf %35, %37 : vector<8x64xf32>
    %39 = vector.extract_strided_slice %1 {offsets = [1, 0], sizes = [1, 64], strides = [1, 1]} : vector<5x64xf32> to vector<1x64xf32>
    %40 = vector.extract_strided_slice %1 {offsets = [2, 0], sizes = [1, 64], strides = [1, 1]} : vector<5x64xf32> to vector<1x64xf32>
    %cst_18 = arith.constant dense<0.000000e+00> : vector<64xf32>
    %41 = vector.multi_reduction <add>, %38, %cst_18 [0] : vector<8x64xf32> to vector<64xf32>
    %42 = vector.shape_cast %41 : vector<64xf32> to vector<1x64xf32>
    %cst_19 = arith.constant 1.250000e-01 : f32
    %43 = vector.broadcast %cst_19 : f32 to vector<1x64xf32>
    %44 = arith.mulf %42, %43 : vector<1x64xf32>
    %45 = vector.broadcast %44 : vector<1x64xf32> to vector<8x64xf32>
    %46 = arith.subf %38, %45 : vector<8x64xf32>
    %47 = arith.mulf %46, %46 : vector<8x64xf32>
    %cst_20 = arith.constant dense<0.000000e+00> : vector<64xf32>
    %48 = vector.multi_reduction <add>, %47, %cst_20 [0] : vector<8x64xf32> to vector<64xf32>
    %49 = vector.shape_cast %48 : vector<64xf32> to vector<1x64xf32>
    %cst_21 = arith.constant 1.250000e-01 : f32
    %50 = vector.broadcast %cst_21 : f32 to vector<1x64xf32>
    %51 = arith.mulf %49, %50 : vector<1x64xf32>
    %cst_22 = arith.constant 9.99999974E-6 : f32
    %52 = vector.broadcast %cst_22 : f32 to vector<1x64xf32>
    %53 = arith.addf %51, %52 : vector<1x64xf32>
    %54 = math.rsqrt %53 : vector<1x64xf32>
    %55 = arith.mulf %39, %54 : vector<1x64xf32>
    %56 = vector.broadcast %55 : vector<1x64xf32> to vector<8x64xf32>
    %57 = arith.mulf %46, %56 : vector<8x64xf32>
    %58 = vector.broadcast %40 : vector<1x64xf32> to vector<8x64xf32>
    %59 = arith.addf %57, %58 : vector<8x64xf32>
    %cst_23 = arith.constant 0.000000e+00 : f32
    %60 = vector.broadcast %cst_23 : f32 to vector<8x64xf32>
    %61 = arith.maximumf %59, %60 : vector<8x64xf32>
    %62 = arith.truncf %61 : vector<8x64xf32> to vector<8x64xbf16>
    %63 = vector.extract_strided_slice %62 {offsets = [0, 0], sizes = [8, 32], strides = [1, 1]} : vector<8x64xbf16> to vector<8x32xbf16>
    %c0_24 = arith.constant 0 : index
    %c0_25 = arith.constant 0 : index
    %64 = vector.load %arg3[%c0_24, %c0_25] : memref<32x128xbf16, #tpu.memory_space<vmem>>, vector<32x128xbf16>
    %cst_26 = arith.constant dense<0.000000e+00> : vector<8x128xf32>
    %65 = tpu.matmul %63, %64, %cst_26 {dimension_numbers = #tpu.dot_dimension_numbers<[1], [0], [0], [1], [0, 0, 1, 1], [], []>} : vector<8x32xbf16>, vector<32x128xbf16>, vector<8x128xf32> -> vector<8x128xf32>
    %66 = vector.extract_strided_slice %2 {offsets = [0, 0], sizes = [1, 128], strides = [1, 1]} : vector<3x128xf32> to vector<1x128xf32>
    %67 = vector.broadcast %66 : vector<1x128xf32> to vector<8x128xf32>
    %68 = arith.addf %65, %67 : vector<8x128xf32>
    %69 = vector.extract_strided_slice %62 {offsets = [0, 32], sizes = [8, 32], strides = [1, 1]} : vector<8x64xbf16> to vector<8x32xbf16>
    %c0_27 = arith.constant 0 : index
    %c0_28 = arith.constant 0 : index
    %70 = vector.load %arg4[%c0_27, %c0_28] : memref<32x128xbf16, #tpu.memory_space<vmem>>, vector<32x128xbf16>
    %cst_29 = arith.constant dense<0.000000e+00> : vector<8x128xf32>
    %71 = tpu.matmul %69, %70, %cst_29 {dimension_numbers = #tpu.dot_dimension_numbers<[1], [0], [0], [1], [0, 0, 1, 1], [], []>} : vector<8x32xbf16>, vector<32x128xbf16>, vector<8x128xf32> -> vector<8x128xf32>
    %72 = vector.extract_strided_slice %2 {offsets = [1, 0], sizes = [1, 128], strides = [1, 1]} : vector<3x128xf32> to vector<1x128xf32>
    %73 = vector.broadcast %72 : vector<1x128xf32> to vector<8x128xf32>
    %74 = arith.addf %71, %73 : vector<8x128xf32>
    %c0_30 = arith.constant 0 : index
    %c0_31 = arith.constant 0 : index
    %c0_32 = arith.constant 0 : index
    %75 = vector.load %arg9[%c0_30, %c0_31, %c0_32] : memref<3x8x128xf32, #tpu.memory_space<vmem>>, vector<1x8x128xf32>
    %76 = vector.shape_cast %75 : vector<1x8x128xf32> to vector<8x128xf32>
    %77 = vector.shape_cast %68 : vector<8x128xf32> to vector<1x8x128xf32>
    tpu.vector_store %arg9[%c0_30, %c0_31, %c0_32], %77 {strides = array<i32>} : memref<3x8x128xf32, #tpu.memory_space<vmem>>, vector<1x8x128xf32>,
    %cst_33 = arith.constant 9.99999997E-7 : f32
    %78 = vector.broadcast %cst_33 : f32 to vector<8x128xf32>
    %79 = arith.addf %74, %78 : vector<8x128xf32>
    %80 = math.exp %79 : vector<8x128xf32>
    %c1 = arith.constant 1 : index
    %c0_34 = arith.constant 0 : index
    %c0_35 = arith.constant 0 : index
    %81 = vector.load %arg9[%c1, %c0_34, %c0_35] : memref<3x8x128xf32, #tpu.memory_space<vmem>>, vector<1x8x128xf32>
    %82 = vector.shape_cast %81 : vector<1x8x128xf32> to vector<8x128xf32>
    %83 = vector.shape_cast %80 : vector<8x128xf32> to vector<1x8x128xf32>
    tpu.vector_store %arg9[%c1, %c0_34, %c0_35], %83 {strides = array<i32>} : memref<3x8x128xf32, #tpu.memory_space<vmem>>, vector<1x8x128xf32>,
    %84 = vector.extract_strided_slice %1 {offsets = [3, 0], sizes = [1, 64], strides = [1, 1]} : vector<5x64xf32> to vector<1x64xf32>
    %85 = vector.extract_strided_slice %1 {offsets = [4, 0], sizes = [1, 64], strides = [1, 1]} : vector<5x64xf32> to vector<1x64xf32>
    %cst_36 = arith.constant dense<0.000000e+00> : vector<64xf32>
    %86 = vector.multi_reduction <add>, %61, %cst_36 [0] : vector<8x64xf32> to vector<64xf32>
    %87 = vector.shape_cast %86 : vector<64xf32> to vector<1x64xf32>
    %cst_37 = arith.constant 1.250000e-01 : f32
    %88 = vector.broadcast %cst_37 : f32 to vector<1x64xf32>
    %89 = arith.mulf %87, %88 : vector<1x64xf32>
    %90 = vector.broadcast %89 : vector<1x64xf32> to vector<8x64xf32>
    %91 = arith.subf %61, %90 : vector<8x64xf32>
    %92 = arith.mulf %91, %91 : vector<8x64xf32>
    %cst_38 = arith.constant dense<0.000000e+00> : vector<64xf32>
    %93 = vector.multi_reduction <add>, %92, %cst_38 [0] : vector<8x64xf32> to vector<64xf32>
    %94 = vector.shape_cast %93 : vector<64xf32> to vector<1x64xf32>
    %cst_39 = arith.constant 1.250000e-01 : f32
    %95 = vector.broadcast %cst_39 : f32 to vector<1x64xf32>
    %96 = arith.mulf %94, %95 : vector<1x64xf32>
    %cst_40 = arith.constant 9.99999974E-6 : f32
    %97 = vector.broadcast %cst_40 : f32 to vector<1x64xf32>
    %98 = arith.addf %96, %97 : vector<1x64xf32>
    %99 = math.rsqrt %98 : vector<1x64xf32>
    %100 = arith.mulf %84, %99 : vector<1x64xf32>
    %101 = vector.broadcast %100 : vector<1x64xf32> to vector<8x64xf32>
    %102 = arith.mulf %91, %101 : vector<8x64xf32>
    %103 = vector.broadcast %85 : vector<1x64xf32> to vector<8x64xf32>
    %104 = arith.addf %102, %103 : vector<8x64xf32>
    %105 = arith.truncf %104 : vector<8x64xf32> to vector<8x64xbf16>
    %106 = vector.extract_strided_slice %0 {offsets = [3, 0], sizes = [1, 32], strides = [1, 1]} : vector<5x32xf32> to vector<1x32xf32>
    %107 = vector.extract_strided_slice %0 {offsets = [4, 0], sizes = [1, 32], strides = [1, 1]} : vector<5x32xf32> to vector<1x32xf32>
    %cst_41 = arith.constant dense<0.000000e+00> : vector<32xf32>
    %108 = vector.multi_reduction <add>, %32, %cst_41 [0] : vector<8x32xf32> to vector<32xf32>
    %109 = vector.shape_cast %108 : vector<32xf32> to vector<1x32xf32>
    %cst_42 = arith.constant 1.250000e-01 : f32
    %110 = vector.broadcast %cst_42 : f32 to vector<1x32xf32>
    %111 = arith.mulf %109, %110 : vector<1x32xf32>
    %112 = vector.broadcast %111 : vector<1x32xf32> to vector<8x32xf32>
    %113 = arith.subf %32, %112 : vector<8x32xf32>
    %114 = arith.mulf %113, %113 : vector<8x32xf32>
    %cst_43 = arith.constant dense<0.000000e+00> : vector<32xf32>
    %115 = vector.multi_reduction <add>, %114, %cst_43 [0] : vector<8x32xf32> to vector<32xf32>
    %116 = vector.shape_cast %115 : vector<32xf32> to vector<1x32xf32>
    %cst_44 = arith.constant 1.250000e-01 : f32
    %117 = vector.broadcast %cst_44 : f32 to vector<1x32xf32>
    %118 = arith.mulf %116, %117 : vector<1x32xf32>
    %cst_45 = arith.constant 9.99999974E-6 : f32
    %119 = vector.broadcast %cst_45 : f32 to vector<1x32xf32>
    %120 = arith.addf %118, %119 : vector<1x32xf32>
    %121 = math.rsqrt %120 : vector<1x32xf32>
    %122 = arith.mulf %106, %121 : vector<1x32xf32>
    %123 = vector.broadcast %122 : vector<1x32xf32> to vector<8x32xf32>
    %124 = arith.mulf %113, %123 : vector<8x32xf32>
    %125 = vector.broadcast %107 : vector<1x32xf32> to vector<8x32xf32>
    %126 = arith.addf %124, %125 : vector<8x32xf32>
    %127 = arith.truncf %126 : vector<8x32xf32> to vector<8x32xbf16>
    %c0_46 = arith.constant 0 : index
    %c0_47 = arith.constant 0 : index
    %128 = vector.load %arg5[%c0_46, %c0_47] : memref<96x128xbf16, #tpu.memory_space<vmem>>, vector<64x128xbf16>
    %cst_48 = arith.constant dense<0.000000e+00> : vector<8x128xf32>
    %129 = tpu.matmul %105, %128, %cst_48 {dimension_numbers = #tpu.dot_dimension_numbers<[1], [0], [0], [1], [0, 0, 1, 1], [], []>} : vector<8x64xbf16>, vector<64x128xbf16>, vector<8x128xf32> -> vector<8x128xf32>
    %c64 = arith.constant 64 : index
    %c0_49 = arith.constant 0 : index
    %130 = vector.load %arg5[%c64, %c0_49] : memref<96x128xbf16, #tpu.memory_space<vmem>>, vector<32x128xbf16>
    %cst_50 = arith.constant dense<0.000000e+00> : vector<8x128xf32>
    %131 = tpu.matmul %127, %130, %cst_50 {dimension_numbers = #tpu.dot_dimension_numbers<[1], [0], [0], [1], [0, 0, 1, 1], [], []>} : vector<8x32xbf16>, vector<32x128xbf16>, vector<8x128xf32> -> vector<8x128xf32>
    %132 = arith.addf %129, %131 : vector<8x128xf32>
    %133 = vector.extract_strided_slice %2 {offsets = [2, 0], sizes = [1, 128], strides = [1, 1]} : vector<3x128xf32> to vector<1x128xf32>
    %134 = vector.broadcast %133 : vector<1x128xf32> to vector<8x128xf32>
    %135 = arith.addf %132, %134 : vector<8x128xf32>
    %cst_51 = arith.constant dense<0xFF800000> : vector<8xf32>
    %136 = vector.multi_reduction <maximumf>, %135, %cst_51 [1] : vector<8x128xf32> to vector<8xf32>
    %137 = vector.shape_cast %136 : vector<8xf32> to vector<8x1xf32>
    %138 = vector.broadcast %137 : vector<8x1xf32> to vector<8x128xf32>
    %139 = arith.subf %135, %138 : vector<8x128xf32>
    %140 = math.exp %139 : vector<8x128xf32>
    %cst_52 = arith.constant dense<0.000000e+00> : vector<8xf32>
    %141 = vector.multi_reduction <add>, %140, %cst_52 [1] : vector<8x128xf32> to vector<8xf32>
    %142 = vector.shape_cast %141 : vector<8xf32> to vector<8x1xf32>
    %143 = tpu.reciprocal %142 : vector<8x1xf32> -> vector<8x1xf32>
    %144 = vector.broadcast %143 : vector<8x1xf32> to vector<8x128xf32>
    %145 = arith.mulf %140, %144 : vector<8x128xf32>
    %c2 = arith.constant 2 : index
    %c0_53 = arith.constant 0 : index
    %c0_54 = arith.constant 0 : index
    %146 = vector.load %arg9[%c2, %c0_53, %c0_54] : memref<3x8x128xf32, #tpu.memory_space<vmem>>, vector<1x8x128xf32>
    %147 = vector.shape_cast %146 : vector<1x8x128xf32> to vector<8x128xf32>
    %148 = vector.shape_cast %145 : vector<8x128xf32> to vector<1x8x128xf32>
    tpu.vector_store %arg9[%c2, %c0_53, %c0_54], %148 {strides = array<i32>} : memref<3x8x128xf32, #tpu.memory_space<vmem>>, vector<1x8x128xf32>,
    return
  }
}

</mosaic_0001>

<llo_original>
// kernel: tpu_custom_call.1
$region0: #{tpu_custom_call.1}
  #allocation0 [shape = 'u32[]', space=smem, size = 0x4, offset = 0x4, fixed_abs, tag = 'smem constant byte address 0x4 - core index']
  #allocation1 [shape = 'u32[144,128]{1,0:T(1,128)}', space=vmem, size = 0x12000, scoped, tag = 'internal scratch']
  %s0 = inlined_call_operand.hbm [shape: f32[8,16], index: 0, kind: input, shape index: {}]
  %s1 = inlined_call_operand.hbm [shape: bf16[16,32], index: 1, kind: input, shape index: {}]
  %s2 = inlined_call_operand.hbm [shape: bf16[32,64], index: 2, kind: input, shape index: {}]
  %s3 = inlined_call_operand.hbm [shape: bf16[32,128], index: 3, kind: input, shape index: {}]
  %s4 = inlined_call_operand.hbm [shape: bf16[32,128], index: 4, kind: input, shape index: {}]
  %s5 = inlined_call_operand.hbm [shape: bf16[96,128], index: 5, kind: input, shape index: {}]
  %s6 = inlined_call_operand.vmem [shape: f32[5,32], index: 6, kind: input, shape index: {}]
  %s7 = inlined_call_operand.hbm [shape: f32[5,64], index: 7, kind: input, shape index: {}]
  %s8 = inlined_call_operand.vmem [shape: f32[3,128], index: 8, kind: input, shape index: {}]
  %s9 = inlined_call_operand.hbm [shape: f32[3,8,128], index: 9, kind: output, shape index: {}]
  %s10 = sld [smem:[#allocation0]]
  $region74: #{tpu_custom_call.1} parent=0
    _
  %s12 = ssub.s32 1, %s10
  %s13 = scalar_select 0, %s12, %s10
  $region1: #{tpu_custom_call.1} parent=0
    #allocation2 [shape = 'u8[4096]{0}', space=vmem, size = 0x1000, scoped, tag = 'input window, operand 0, single buffered']
    #allocation3 [shape = 's32[1]{0}', space=sflag, size = 0x4, scoped, tag = 'scoped memory for tpu_custom_call.1']
    #allocation4 [shape = 's32[1]{0}', space=sflag, size = 0x4, scoped, tag = 'scoped memory for tpu_custom_call.1']
    #allocation5 [shape = 'u8[4096]{0}', space=vmem, size = 0x1000, scoped, tag = 'input window, operand 1, single buffered']
    #allocation6 [shape = 's32[1]{0}', space=sflag, size = 0x4, scoped, tag = 'scoped memory for tpu_custom_call.1']
    #allocation7 [shape = 'u8[8192]{0}', space=vmem, size = 0x2000, scoped, tag = 'input window, operand 2, single buffered']
    #allocation8 [shape = 'u8[8192]{0}', space=vmem, size = 0x2000, scoped, tag = 'input window, operand 3, single buffered']
    #allocation9 [shape = 's32[1]{0}', space=sflag, size = 0x4, scoped, tag = 'scoped memory for tpu_custom_call.1']
    #allocation10 [shape = 'u8[8192]{0}', space=vmem, size = 0x2000, scoped, tag = 'input window, operand 4, single buffered']
    #allocation11 [shape = 'u8[24576]{0}', space=vmem, size = 0x6000, scoped, tag = 'input window, operand 5, single buffered']
    #allocation12 [shape = 's32[1]{0}', space=sflag, size = 0x4, scoped, tag = 'scoped memory for tpu_custom_call.1']
    #allocation13 [shape = 'u8[4096]{0}', space=vmem, size = 0x1000, scoped, tag = 'input window, operand 7, single buffered']
    #allocation14 [shape = 'u8[12288]{0}', space=vmem, size = 0x3000, scoped, tag = 'output window, operand 0, single buffered']
    %14 = vsyncpa [#allocation3], 0
    %15 = vsyncpa [#allocation6], 0
    %16 = vsyncpa [#allocation9], 0
    %17 = vsyncpa [#allocation12], 0
    %18 = vsyncpa [#allocation4], 0
    // Predicated region
    $region2: #{tpu_custom_call.1} parent=1 // pred_check
      _
    $region3: #{tpu_custom_call.1} parent=1 // pred_check_branch
      %20 = sbr.rel (0) target = $region5
    $region4: #{tpu_custom_call.1} parent=1 // pred_region
      %s22 = ssub.s32 128, 128
      %23 = vsyncadd [#allocation3], %s22
      %s25 = sshll.u32 [#allocation2], 4
      %s26 = int_to_ptr.vmem [resolvable:$true] %s25
      %28 = dma.hbm_to_vmem [thread:$0]  %s0, 128, %s26, [#allocation3]
    $region5: #{tpu_custom_call.1} parent=1 // pred_fallthru
      _
    // Predicated region
    $region6: #{tpu_custom_call.1} parent=1 // pred_check
      _
    $region7: #{tpu_custom_call.1} parent=1 // pred_check_branch
      %30 = sbr.rel (0) target = $region9
    $region8: #{tpu_custom_call.1} parent=1 // pred_region
      %s32 = ssub.s32 128, 128
      %33 = vsyncadd [#allocation6], %s32
      %s34 = sshll.u32 [#allocation5], 4
      %s35 = int_to_ptr.vmem [resolvable:$true] %s34
      %40 = dma.hbm_to_vmem [thread:$0]  %s1, 128, %s35, [#allocation6], 64, 64, 4
    $region9: #{tpu_custom_call.1} parent=1 // pred_fallthru
      _
    // Predicated region
    $region10: #{tpu_custom_call.1} parent=1 // pred_check
      _
    $region11: #{tpu_custom_call.1} parent=1 // pred_check_branch
      %42 = sbr.rel (0) target = $region13
    $region12: #{tpu_custom_call.1} parent=1 // pred_region
      %s44 = ssub.s32 256, 256
      %45 = vsyncadd [#allocation6], %s44
      %s46 = sshll.u32 [#allocation7], 4
      %s47 = int_to_ptr.vmem [resolvable:$true] %s46
      %52 = dma.hbm_to_vmem [thread:$0]  %s2, 256, %s47, [#allocation6], 64, 64, 4
    $region13: #{tpu_custom_call.1} parent=1 // pred_fallthru
      _
    // Predicated region
    $region14: #{tpu_custom_call.1} parent=1 // pred_check
      _
    $region15: #{tpu_custom_call.1} parent=1 // pred_check_branch
      %54 = sbr.rel (0) target = $region17
    $region16: #{tpu_custom_call.1} parent=1 // pred_region
      %s56 = ssub.s32 256, 256
      %57 = vsyncadd [#allocation9], %s56
      %s58 = sshll.u32 [#allocation8], 4
      %s59 = int_to_ptr.vmem [resolvable:$true] %s58
      %64 = dma.hbm_to_vmem [thread:$0]  %s3, 256, %s59, [#allocation9], 64, 64, 4
    $region17: #{tpu_custom_call.1} parent=1 // pred_fallthru
      _
    // Predicated region
    $region18: #{tpu_custom_call.1} parent=1 // pred_check
      _
    $region19: #{tpu_custom_call.1} parent=1 // pred_check_branch
      %66 = sbr.rel (0) target = $region21
    $region20: #{tpu_custom_call.1} parent=1 // pred_region
      %s68 = ssub.s32 256, 256
      %69 = vsyncadd [#allocation9], %s68
      %s70 = sshll.u32 [#allocation10], 4
      %s71 = int_to_ptr.vmem [resolvable:$true] %s70
      %76 = dma.hbm_to_vmem [thread:$0]  %s4, 256, %s71, [#allocation9], 64, 64, 4
    $region21: #{tpu_custom_call.1} parent=1 // pred_fallthru
      _
    // Predicated region
    $region22: #{tpu_custom_call.1} parent=1 // pred_check
      _
    $region23: #{tpu_custom_call.1} parent=1 // pred_check_branch
      %78 = sbr.rel (0) target = $region25
    $region24: #{tpu_custom_call.1} parent=1 // pred_region
      %s80 = ssub.s32 768, 768
      %81 = vsyncadd [#allocation12], %s80
      %s82 = sshll.u32 [#allocation11], 4
      %s83 = int_to_ptr.vmem [resolvable:$true] %s82
      %88 = dma.hbm_to_vmem [thread:$0]  %s5, 768, %s83, [#allocation12], 64, 64, 4
    $region25: #{tpu_custom_call.1} parent=1 // pred_fallthru
      _
    // Predicated region
    $region26: #{tpu_custom_call.1} parent=1 // pred_check
      _
    $region27: #{tpu_custom_call.1} parent=1 // pred_check_branch
      %90 = sbr.rel (0) target = $region29
    $region28: #{tpu_custom_call.1} parent=1 // pred_region
      _
    $region29: #{tpu_custom_call.1} parent=1 // pred_fallthru
      _
    // Predicated region
    $region30: #{tpu_custom_call.1} parent=1 // pred_check
      _
    $region31: #{tpu_custom_call.1} parent=1 // pred_check_branch
      %92 = sbr.rel (0) target = $region33
    $region32: #{tpu_custom_call.1} parent=1 // pred_region
      %s94 = ssub.s32 128, 128
      %95 = vsyncadd [#allocation12], %s94
      %s97 = sshll.u32 [#allocation13], 4
      %s98 = int_to_ptr.vmem [resolvable:$true] %s97
      %100 = dma.hbm_to_vmem [thread:$0]  %s7, 128, %s98, [#allocation12]
    $region33: #{tpu_custom_call.1} parent=1 // pred_fallthru
      _
    // Predicated region
    $region34: #{tpu_custom_call.1} parent=1 // pred_check
      _
    $region35: #{tpu_custom_call.1} parent=1 // pred_check_branch
      %102 = sbr.rel (0) target = $region37
    $region36: #{tpu_custom_call.1} parent=1 // pred_region
      _
    $region37: #{tpu_custom_call.1} parent=1 // pred_fallthru
      _
    // Predicated region
    $region38: #{tpu_custom_call.1} parent=1 // pred_check
      _
    $region39: #{tpu_custom_call.1} parent=1 // pred_check_branch
      %104 = sbr.rel (0) target = $region41
    $region40: #{tpu_custom_call.1} parent=1 // pred_region
      %105 = dma.done [#allocation3], 128
    $region41: #{tpu_custom_call.1} parent=1 // pred_fallthru
      _
    // Predicated region
    $region42: #{tpu_custom_call.1} parent=1 // pred_check
      _
    $region43: #{tpu_custom_call.1} parent=1 // pred_check_branch
      %107 = sbr.rel (0) target = $region45
    $region44: #{tpu_custom_call.1} parent=1 // pred_region
      %108 = dma.done [#allocation6], 128
    $region45: #{tpu_custom_call.1} parent=1 // pred_fallthru
      _
    // Predicated region
    $region46: #{tpu_custom_call.1} parent=1 // pred_check
      _
    $region47: #{tpu_custom_call.1} parent=1 // pred_check_branch
      %110 = sbr.rel (0) target = $region49
    $region48: #{tpu_custom_call.1} parent=1 // pred_region
      %111 = dma.done [#allocation6], 256
    $region49: #{tpu_custom_call.1} parent=1 // pred_fallthru
      _
    // Predicated region
    $region50: #{tpu_custom_call.1} parent=1 // pred_check
      _
    $region51: #{tpu_custom_call.1} parent=1 // pred_check_branch
      %113 = sbr.rel (0) target = $region53
    $region52: #{tpu_custom_call.1} parent=1 // pred_region
      %114 = dma.done [#allocation9], 256
    $region53: #{tpu_custom_call.1} parent=1 // pred_fallthru
      _
    // Predicated region
    $region54: #{tpu_custom_call.1} parent=1 // pred_check
      _
    $region55: #{tpu_custom_call.1} parent=1 // pred_check_branch
      %116 = sbr.rel (0) target = $region57
    $region56: #{tpu_custom_call.1} parent=1 // pred_region
      %117 = dma.done [#allocation9], 256
    $region57: #{tpu_custom_call.1} parent=1 // pred_fallthru
      _
    // Predicated region
    $region58: #{tpu_custom_call.1} parent=1 // pred_check
      _
    $region59: #{tpu_custom_call.1} parent=1 // pred_check_branch
      %119 = sbr.rel (0) target = $region61
    $region60: #{tpu_custom_call.1} parent=1 // pred_region
      %120 = dma.done [#allocation12], 768
    $region61: #{tpu_custom_call.1} parent=1 // pred_fallthru
      _
    // Predicated region
    $region62: #{tpu_custom_call.1} parent=1 // pred_check
      _
    $region63: #{tpu_custom_call.1} parent=1 // pred_check_branch
      %122 = sbr.rel (0) target = $region65
    $region64: #{tpu_custom_call.1} parent=1 // pred_region
      %123 = dma.done [#allocation12], 128
    $region65: #{tpu_custom_call.1} parent=1 // pred_fallthru
      _
    %v125 = vld [vmem:[%s6] sm:$0x1f]
    %v126 = vld [vmem:[#allocation13] sm:$0x1f]
    %v127 = vld [vmem:[%s8] sm:$0x7]
    %v128 = vld [vmem:[#allocation2] sm:$0xff]
    %v129 = vpack.c.bf16 %v128, %v128
    %v130 = vld [vmem:[#allocation5] sm:$0xf]
    %v131 = vld [vmem:[#allocation5 + $0x4] sm:$0xf]
    %v132 = vlaneseq
    %v133 = vshrl.u32 %v132, 7
    %v134 = vsub.s32 0, %v133
    %v135 = vrot.slane %v125, %v134
    %v138 = vunpack.c.l.b16 %v130
    %v139 = vunpack.c.l.b16 %v131
    %v140 = vpack.c.b16 %v139, %v138
    %vm142 = vcmask 130048
    %v144 = vsel %vm142, %v129, 0
    %146 = vmatprep.subr.bf16.mxu0 0
    %147 = vmatpush1.bf16.msra.mxu0 0
    %148 = vmatprep.subr.bf16.mxu0 0
    %149 = vmatpush1.bf16.msra.mxu0 0
    %150 = vmatprep.subr.bf16.mxu0 0
    %151 = vmatpush1.bf16.msra.mxu0 0
    %152 = vmatprep.subr.bf16.mxu0 0
    %153 = vmatpush1.bf16.msra.mxu0 0
    %154 = vmatprep.subr.bf16.mxu0 0
    %155 = vmatpush1.bf16.msra.mxu0 0
    %156 = vmatprep.subr.bf16.mxu0 0
    %157 = vmatpush1.bf16.msra.mxu0 0
    %158 = vmatprep.subr.bf16.mxu0 0
    %159 = vmatpush1.bf16.msra.mxu0 0
    %160 = vmatprep.subr.bf16.mxu0 0
    %161 = vmatpush1.bf16.msra.mxu0 %v140
    %162 = vmatprep.subr.bf16.mxu0 0
    %163 = vmatpush2.bf16.msra.mxu0 0
    %164 = vmatprep.subr.bf16.mxu0 0
    %165 = vmatpush2.bf16.msra.mxu0 0
    %166 = vmatprep.subr.bf16.mxu0 0
    %167 = vmatpush2.bf16.msra.mxu0 0
    %168 = vmatprep.subr.bf16.mxu0 0
    %169 = vmatpush2.bf16.msra.mxu0 0
    %170 = vmatprep.subr.bf16.mxu0 0
    %171 = vmatpush2.bf16.msra.mxu0 0
    %172 = vmatprep.subr.bf16.mxu0 0
    %173 = vmatpush2.bf16.msra.mxu0 0
    %174 = vmatprep.subr.bf16.mxu0 0
    %175 = vmatpush2.bf16.msra.mxu0 0
    %176 = vmatprep.subr.bf16.mxu0 0
    %177 = vmatpush2.bf16.msra.mxu0 0
    %178 = vmatprep.mubr.bf16.mxu0 0
    %179 = vmatmul.mubr.bf16.gmra.mxu0 %v144
    %v180 = vpop.f32.mrf.mxu0
    %v181 = vadd.f32 %v135, %v180
    %v182 = vpop.f32.mrf.mxu0
    %v183 = vpop.f32.mrf.mxu0
    %v184 = vpop.f32.mrf.mxu0
    %185 = vdwg.mxu0
    %vm186 = vcmask 261120
    %v187 = vsel %vm186, %v181, 0.0
    %v188 = vrot.slane %v187, 4
    %v189 = vadd.f32 %v187, %v188
    %v190 = vrot.slane %v189, 2
    %v191 = vadd.f32 %v189, %v190
    %v192 = vrot.slane %v191, 1
    %v193 = vadd.f32 %v191, %v192
    %v194 = vmul.f32 %v193, 0.125
    %v195 = vsub.f32 %v181, %v194
    %v196 = vmul.f32 %v195, %v195
    %v197 = vsel %vm186, %v196, 0.0
    %v198 = vrot.slane %v197, 4
    %v199 = vadd.f32 %v197, %v198
    %v200 = vrot.slane %v199, 2
    %v201 = vadd.f32 %v199, %v200
    %v202 = vrot.slane %v201, 1
    %v203 = vadd.f32 %v201, %v202
    %v204 = vmul.f32 %v203, 0.125
    %v205 = vadd.f32 %v204, 1e-05
    %v206 = vrsqrt.pop %v205
    %v207 = vmul.f32 %v125, %v206
    %v208 = vlaneseq
    %v209 = vshrl.u32 %v208, 7
    %v210 = vsub.s32 1, %v209
    %v211 = vrot.slane %v207, %v210
    %v212 = vmul.f32 %v195, %v211
    %v213 = vlaneseq
    %v214 = vshrl.u32 %v213, 7
    %v215 = vsub.s32 2, %v214
    %v216 = vrot.slane %v125, %v215
    %v217 = vadd.f32 %v212, %v216
    %v218 = vmax.f32 %v217, 0.0
    %v219 = vpack.c.bf16 %v218, %v218
    %v220 = vld [vmem:[#allocation7] sm:$0xf]
    %v221 = vld [vmem:[#allocation7 + $0x4] sm:$0xf]
    %v222 = vld [vmem:[#allocation7 + $0x8] sm:$0xf]
    %v223 = vld [vmem:[#allocation7 + $0xc] sm:$0xf]
    %v224 = vlaneseq
    %v225 = vshrl.u32 %v224, 7
    %v226 = vsub.s32 0, %v225
    %v227 = vrot.slane %v126, %v226
    %v232 = vunpack.c.l.b16 %v220
    %v233 = vunpack.c.l.b16 %v221
    %v234 = vunpack.c.l.b16 %v222
    %v235 = vunpack.c.l.b16 %v223
    %v236 = vpack.c.b16 %v233, %v232
    %v237 = vpack.c.b16 %v235, %v234
    %v241 = vsel %vm186, %v219, 0
    %243 = vmatprep.subr.bf16.mxu0 0
    %244 = vmatpush1.bf16.msra.mxu0 0
    %245 = vmatprep.subr.bf16.mxu0 0
    %246 = vmatpush1.bf16.msra.mxu0 0
    %247 = vmatprep.subr.bf16.mxu0 0
    %248 = vmatpush1.bf16.msra.mxu0 0
    %249 = vmatprep.subr.bf16.mxu0 0
    %250 = vmatpush1.bf16.msra.mxu0 0
    %251 = vmatprep.subr.bf16.mxu0 0
    %252 = vmatpush1.bf16.msra.mxu0 0
    %253 = vmatprep.subr.bf16.mxu0 0
    %254 = vmatpush1.bf16.msra.mxu0 0
    %255 = vmatprep.subr.bf16.mxu0 0
    %256 = vmatpush1.bf16.msra.mxu0 %v237
    %257 = vmatprep.subr.bf16.mxu0 0
    %258 = vmatpush1.bf16.msra.mxu0 %v236
    %259 = vmatprep.subr.bf16.mxu0 0
    %260 = vmatpush2.bf16.msra.mxu0 0
    %261 = vmatprep.subr.bf16.mxu0 0
    %262 = vmatpush2.bf16.msra.mxu0 0
    %263 = vmatprep.subr.bf16.mxu0 0
    %264 = vmatpush2.bf16.msra.mxu0 0
    %265 = vmatprep.subr.bf16.mxu0 0
    %266 = vmatpush2.bf16.msra.mxu0 0
    %267 = vmatprep.subr.bf16.mxu0 0
    %268 = vmatpush2.bf16.msra.mxu0 0
    %269 = vmatprep.subr.bf16.mxu0 0
    %270 = vmatpush2.bf16.msra.mxu0 0
    %271 = vmatprep.subr.bf16.mxu0 0
    %272 = vmatpush2.bf16.msra.mxu0 0
    %273 = vmatprep.subr.bf16.mxu0 0
    %274 = vmatpush2.bf16.msra.mxu0 0
    %275 = vmatprep.mubr.bf16.mxu0 0
    %276 = vmatmul.mubr.bf16.gmra.mxu0 %v241
    %v277 = vpop.f32.mrf.mxu0
    %v278 = vadd.f32 %v227, %v277
    %v279 = vpop.f32.mrf.mxu0
    %v280 = vpop.f32.mrf.mxu0
    %v281 = vpop.f32.mrf.mxu0
    %282 = vdwg.mxu0
    %vm283 = vcmask 523264
    %v284 = vsel %vm283, %v278, 0.0
    %v285 = vrot.slane %v284, 4
    %v286 = vadd.f32 %v284, %v285
    %v287 = vrot.slane %v286, 2
    %v288 = vadd.f32 %v286, %v287
    %v289 = vrot.slane %v288, 1
    %v290 = vadd.f32 %v288, %v289
    %v291 = vmul.f32 %v290, 0.125
    %v292 = vsub.f32 %v278, %v291
    %v293 = vmul.f32 %v292, %v292
    %v294 = vsel %vm283, %v293, 0.0
    %v295 = vrot.slane %v294, 4
    %v296 = vadd.f32 %v294, %v295
    %v297 = vrot.slane %v296, 2
    %v298 = vadd.f32 %v296, %v297
    %v299 = vrot.slane %v298, 1
    %v300 = vadd.f32 %v298, %v299
    %v301 = vmul.f32 %v300, 0.125
    %v302 = vadd.f32 %v301, 1e-05
    %v303 = vrsqrt.pop %v302
    %v304 = vmul.f32 %v126, %v303
    %v305 = vlaneseq
    %v306 = vshrl.u32 %v305, 7
    %v307 = vsub.s32 1, %v306
    %v308 = vrot.slane %v304, %v307
    %v309 = vmul.f32 %v292, %v308
    %v310 = vlaneseq
    %v311 = vshrl.u32 %v310, 7
    %v312 = vsub.s32 2, %v311
    %v313 = vrot.slane %v126, %v312
    %v314 = vadd.f32 %v309, %v313
    %v315 = vmax.f32 %v314, 0.0
    %v316 = vpack.c.bf16 %v315, %v315
    %v317 = vld [vmem:[#allocation8] sm:$0xf]
    %v318 = vld [vmem:[#allocation8 + $0x4] sm:$0xf]
    %v319 = vld [vmem:[#allocation8 + $0x8] sm:$0xf]
    %v320 = vld [vmem:[#allocation8 + $0xc] sm:$0xf]
    %v321 = vlaneseq
    %v322 = vshrl.u32 %v321, 7
    %v323 = vsub.s32 0, %v322
    %v324 = vrot.slane %v127, %v323
    %v329 = vunpack.c.l.b16 %v317
    %v330 = vunpack.c.l.b16 %v318
    %v331 = vunpack.c.l.b16 %v319
    %v332 = vunpack.c.l.b16 %v320
    %v333 = vpack.c.b16 %v330, %v329
    %v334 = vpack.c.b16 %v332, %v331
    %v338 = vsel %vm186, %v316, 0
    %340 = vmatprep.subr.bf16.mxu0 0
    %341 = vmatpush1.bf16.msra.mxu0 0
    %342 = vmatprep.subr.bf16.mxu0 0
    %343 = vmatpush1.bf16.msra.mxu0 0
    %344 = vmatprep.subr.bf16.mxu0 0
    %345 = vmatpush1.bf16.msra.mxu0 0
    %346 = vmatprep.subr.bf16.mxu0 0
    %347 = vmatpush1.bf16.msra.mxu0 0
    %348 = vmatprep.subr.bf16.mxu0 0
    %349 = vmatpush1.bf16.msra.mxu0 0
    %350 = vmatprep.subr.bf16.mxu0 0
    %351 = vmatpush1.bf16.msra.mxu0 0
    %352 = vmatprep.subr.bf16.mxu0 0
    %353 = vmatpush1.bf16.msra.mxu0 %v334
    %354 = vmatprep.subr.bf16.mxu0 0
    %355 = vmatpush1.bf16.msra.mxu0 %v333
    %356 = vmatprep.subr.bf16.mxu0 0
    %357 = vmatpush2.bf16.msra.mxu0 0
    %358 = vmatprep.subr.bf16.mxu0 0
    %359 = vmatpush2.bf16.msra.mxu0 0
    %360 = vmatprep.subr.bf16.mxu0 0
    %361 = vmatpush2.bf16.msra.mxu0 0
    %362 = vmatprep.subr.bf16.mxu0 0
    %363 = vmatpush2.bf16.msra.mxu0 0
    %364 = vmatprep.subr.bf16.mxu0 0
    %365 = vmatpush2.bf16.msra.mxu0 0
    %366 = vmatprep.subr.bf16.mxu0 0
    %367 = vmatpush2.bf16.msra.mxu0 0
    %368 = vmatprep.subr.bf16.mxu0 0
    %369 = vmatpush2.bf16.msra.mxu0 0
    %370 = vmatprep.subr.bf16.mxu0 0
    %371 = vmatpush2.bf16.msra.mxu0 0
    %372 = vmatprep.mubr.bf16.mxu0 0
    %373 = vmatmul.mubr.bf16.gmra.mxu0 %v338
    %v374 = vpop.f32.mrf.mxu0
    %v375 = vadd.f32 %v324, %v374
    %v376 = vpop.f32.mrf.mxu0
    %v377 = vpop.f32.mrf.mxu0
    %v378 = vpop.f32.mrf.mxu0
    %379 = vdwg.mxu0
    %v380 = vld [vmem:[#allocation10] sm:$0xf]
    %v381 = vld [vmem:[#allocation10 + $0x4] sm:$0xf]
    %v382 = vld [vmem:[#allocation10 + $0x8] sm:$0xf]
    %v383 = vld [vmem:[#allocation10 + $0xc] sm:$0xf]
    %v384 = vlaneseq
    %v385 = vshrl.u32 %v384, 7
    %v386 = vsub.s32 1, %v385
    %v387 = vrot.slane %v127, %v386
    %389 = vrot.lane.b32.xlu0 %v316, 96
    %v390 = vpop.permute.xlu0 %389
    %v395 = vunpack.c.l.b16 %v380
    %v396 = vunpack.c.l.b16 %v381
    %v397 = vunpack.c.l.b16 %v382
    %v398 = vunpack.c.l.b16 %v383
    %v399 = vpack.c.b16 %v396, %v395
    %v400 = vpack.c.b16 %v398, %v397
    %v404 = vsel %vm186, %v390, 0
    %406 = vmatprep.subr.bf16.mxu0 0
    %407 = vmatpush1.bf16.msra.mxu0 0
    %408 = vmatprep.subr.bf16.mxu0 0
    %409 = vmatpush1.bf16.msra.mxu0 0
    %410 = vmatprep.subr.bf16.mxu0 0
    %411 = vmatpush1.bf16.msra.mxu0 0
    %412 = vmatprep.subr.bf16.mxu0 0
    %413 = vmatpush1.bf16.msra.mxu0 0
    %414 = vmatprep.subr.bf16.mxu0 0
    %415 = vmatpush1.bf16.msra.mxu0 0
    %416 = vmatprep.subr.bf16.mxu0 0
    %417 = vmatpush1.bf16.msra.mxu0 0
    %418 = vmatprep.subr.bf16.mxu0 0
    %419 = vmatpush1.bf16.msra.mxu0 %v400
    %420 = vmatprep.subr.bf16.mxu0 0
    %421 = vmatpush1.bf16.msra.mxu0 %v399
    %422 = vmatprep.subr.bf16.mxu0 0
    %423 = vmatpush2.bf16.msra.mxu0 0
    %424 = vmatprep.subr.bf16.mxu0 0
    %425 = vmatpush2.bf16.msra.mxu0 0
    %426 = vmatprep.subr.bf16.mxu0 0
    %427 = vmatpush2.bf16.msra.mxu0 0
    %428 = vmatprep.subr.bf16.mxu0 0
    %429 = vmatpush2.bf16.msra.mxu0 0
    %430 = vmatprep.subr.bf16.mxu0 0
    %431 = vmatpush2.bf16.msra.mxu0 0
    %432 = vmatprep.subr.bf16.mxu0 0
    %433 = vmatpush2.bf16.msra.mxu0 0
    %434 = vmatprep.subr.bf16.mxu0 0
    %435 = vmatpush2.bf16.msra.mxu0 0
    %436 = vmatprep.subr.bf16.mxu0 0
    %437 = vmatpush2.bf16.msra.mxu0 0
    %438 = vmatprep.mubr.bf16.mxu0 0
    %439 = vmatmul.mubr.bf16.gmra.mxu0 %v404
    %v440 = vpop.f32.mrf.mxu0
    %v441 = vadd.f32 %v387, %v440
    %v442 = vpop.f32.mrf.mxu0
    %v443 = vpop.f32.mrf.mxu0
    %v444 = vpop.f32.mrf.mxu0
    %445 = vdwg.mxu0
    %446 = vst [vmem:[#allocation14] sm:$0xff] %v375
    %v447 = vadd.f32 %v441, 1e-06
    %v448 = vmul.f32 %v447, 1.442695
    %v449 = vpow.pop %v448
    %s450 = scalar_lea.vmem [#allocation14], 8
    %451 = vst [vmem:[%s450] sm:$0xff] %v449
    %v452 = vsel %vm283, %v315, 0.0
    %v453 = vrot.slane %v452, 4
    %v454 = vadd.f32 %v452, %v453
    %v455 = vrot.slane %v454, 2
    %v456 = vadd.f32 %v454, %v455
    %v457 = vrot.slane %v456, 1
    %v458 = vadd.f32 %v456, %v457
    %v459 = vmul.f32 %v458, 0.125
    %v460 = vsub.f32 %v315, %v459
    %v461 = vmul.f32 %v460, %v460
    %v462 = vsel %vm283, %v461, 0.0
    %v463 = vrot.slane %v462, 4
    %v464 = vadd.f32 %v462, %v463
    %v465 = vrot.slane %v464, 2
    %v466 = vadd.f32 %v464, %v465
    %v467 = vrot.slane %v466, 1
    %v468 = vadd.f32 %v466, %v467
    %v469 = vmul.f32 %v468, 0.125
    %v470 = vadd.f32 %v469, 1e-05
    %v471 = vrsqrt.pop %v470
    %v472 = vmul.f32 %v126, %v471
    %v473 = vlaneseq
    %v474 = vshrl.u32 %v473, 7
    %v475 = vsub.s32 3, %v474
    %v476 = vrot.slane %v472, %v475
    %v477 = vmul.f32 %v460, %v476
    %v478 = vlaneseq
    %v479 = vshrl.u32 %v478, 7
    %v480 = vsub.s32 4, %v479
    %v481 = vrot.slane %v126, %v480
    %v482 = vadd.f32 %v477, %v481
    %v483 = vpack.c.bf16 %v482, %v482
    %v484 = vsel %vm186, %v218, 0.0
    %v485 = vrot.slane %v484, 4
    %v486 = vadd.f32 %v484, %v485
    %v487 = vrot.slane %v486, 2
    %v488 = vadd.f32 %v486, %v487
    %v489 = vrot.slane %v488, 1
    %v490 = vadd.f32 %v488, %v489
    %v491 = vmul.f32 %v490, 0.125
    %v492 = vsub.f32 %v218, %v491
    %v493 = vmul.f32 %v492, %v492
    %v494 = vsel %vm186, %v493, 0.0
    %v495 = vrot.slane %v494, 4
    %v496 = vadd.f32 %v494, %v495
    %v497 = vrot.slane %v496, 2
    %v498 = vadd.f32 %v496, %v497
    %v499 = vrot.slane %v498, 1
    %v500 = vadd.f32 %v498, %v499
    %v501 = vmul.f32 %v500, 0.125
    %v502 = vadd.f32 %v501, 1e-05
    %v503 = vrsqrt.pop %v502
    %v504 = vmul.f32 %v125, %v503
    %v505 = vlaneseq
    %v506 = vshrl.u32 %v505, 7
    %v507 = vsub.s32 3, %v506
    %v508 = vrot.slane %v504, %v507
    %v509 = vmul.f32 %v492, %v508
    %v510 = vlaneseq
    %v511 = vshrl.u32 %v510, 7
    %v512 = vsub.s32 4, %v511
    %v513 = vrot.slane %v125, %v512
    %v514 = vadd.f32 %v509, %v513
    %v515 = vpack.c.bf16 %v514, %v514
    %v516 = vld [vmem:[#allocation11] sm:$0xf]
    %v517 = vld [vmem:[#allocation11 + $0x4] sm:$0xf]
    %v518 = vld [vmem:[#allocation11 + $0x8] sm:$0xf]
    %v519 = vld [vmem:[#allocation11 + $0xc] sm:$0xf]
    %v520 = vld [vmem:[#allocation11 + $0x10] sm:$0xf]
    %v521 = vld [vmem:[#allocation11 + $0x14] sm:$0xf]
    %v522 = vld [vmem:[#allocation11 + $0x18] sm:$0xf]
    %v523 = vld [vmem:[#allocation11 + $0x1c] sm:$0xf]
    %v524 = vld [vmem:[#allocation11 + $0x20] sm:$0xf]
    %v525 = vld [vmem:[#allocation11 + $0x24] sm:$0xf]
    %v526 = vld [vmem:[#allocation11 + $0x28] sm:$0xf]
    %v527 = vld [vmem:[#allocation11 + $0x2c] sm:$0xf]
    %v532 = vunpack.c.l.b16 %v524
    %v533 = vunpack.c.l.b16 %v525
    %v534 = vunpack.c.l.b16 %v526
    %v535 = vunpack.c.l.b16 %v527
    %v536 = vpack.c.b16 %v533, %v532
    %v537 = vpack.c.b16 %v535, %v534
    %v541 = vsel %vm186, %v515, 0
    %543 = vmatprep.subr.bf16.mxu0 0
    %544 = vmatpush1.bf16.msra.mxu0 0
    %545 = vmatprep.subr.bf16.mxu0 0
    %546 = vmatpush1.bf16.msra.mxu0 0
    %547 = vmatprep.subr.bf16.mxu0 0
    %548 = vmatpush1.bf16.msra.mxu0 0
    %549 = vmatprep.subr.bf16.mxu0 0
    %550 = vmatpush1.bf16.msra.mxu0 0
    %551 = vmatprep.subr.bf16.mxu0 0
    %552 = vmatpush1.bf16.msra.mxu0 0
    %553 = vmatprep.subr.bf16.mxu0 0
    %554 = vmatpush1.bf16.msra.mxu0 0
    %555 = vmatprep.subr.bf16.mxu0 0
    %556 = vmatpush1.bf16.msra.mxu0 %v537
    %557 = vmatprep.subr.bf16.mxu0 0
    %558 = vmatpush1.bf16.msra.mxu0 %v536
    %559 = vmatprep.subr.bf16.mxu0 0
    %560 = vmatpush2.bf16.msra.mxu0 0
    %561 = vmatprep.subr.bf16.mxu0 0
    %562 = vmatpush2.bf16.msra.mxu0 0
    %563 = vmatprep.subr.bf16.mxu0 0
    %564 = vmatpush2.bf16.msra.mxu0 0
    %565 = vmatprep.subr.bf16.mxu0 0
    %566 = vmatpush2.bf16.msra.mxu0 0
    %567 = vmatprep.subr.bf16.mxu0 0
    %568 = vmatpush2.bf16.msra.mxu0 0
    %569 = vmatprep.subr.bf16.mxu0 0
    %570 = vmatpush2.bf16.msra.mxu0 0
    %571 = vmatprep.subr.bf16.mxu0 0
    %572 = vmatpush2.bf16.msra.mxu0 0
    %573 = vmatprep.subr.bf16.mxu0 0
    %574 = vmatpush2.bf16.msra.mxu0 0
    %575 = vmatprep.mubr.bf16.mxu0 0
    %576 = vmatmul.mubr.bf16.gmra.mxu0 %v541
    %v577 = vpop.f32.mrf.mxu0
    %v578 = vadd.f32 0.0, %v577
    %v579 = vpop.f32.mrf.mxu0
    %v580 = vpop.f32.mrf.mxu0
    %v581 = vpop.f32.mrf.mxu0
    %582 = vdwg.mxu0
    %v591 = vunpack.c.l.b16 %v516
    %v592 = vunpack.c.l.b16 %v517
    %v593 = vunpack.c.l.b16 %v518
    %v594 = vunpack.c.l.b16 %v519
    %v595 = vunpack.c.l.b16 %v520
    %v596 = vunpack.c.l.b16 %v521
    %v597 = vunpack.c.l.b16 %v522
    %v598 = vunpack.c.l.b16 %v523
    %v599 = vpack.c.b16 %v592, %v591
    %v600 = vpack.c.b16 %v594, %v593
    %v601 = vpack.c.b16 %v596, %v595
    %v602 = vpack.c.b16 %v598, %v597
    %v608 = vsel %vm283, %v483, 0
    %610 = vmatprep.subr.bf16.mxu0 0
    %611 = vmatpush1.bf16.msra.mxu0 0
    %612 = vmatprep.subr.bf16.mxu0 0
    %613 = vmatpush1.bf16.msra.mxu0 0
    %614 = vmatprep.subr.bf16.mxu0 0
    %615 = vmatpush1.bf16.msra.mxu0 0
    %616 = vmatprep.subr.bf16.mxu0 0
    %617 = vmatpush1.bf16.msra.mxu0 0
    %618 = vmatprep.subr.bf16.mxu0 0
    %619 = vmatpush1.bf16.msra.mxu0 %v602
    %620 = vmatprep.subr.bf16.mxu0 0
    %621 = vmatpush1.bf16.msra.mxu0 %v601
    %622 = vmatprep.subr.bf16.mxu0 0
    %623 = vmatpush1.bf16.msra.mxu0 %v600
    %624 = vmatprep.subr.bf16.mxu0 0
    %625 = vmatpush1.bf16.msra.mxu0 %v599
    %626 = vmatprep.subr.bf16.mxu0 0
    %627 = vmatpush2.bf16.msra.mxu0 0
    %628 = vmatprep.subr.bf16.mxu0 0
    %629 = vmatpush2.bf16.msra.mxu0 0
    %630 = vmatprep.subr.bf16.mxu0 0
    %631 = vmatpush2.bf16.msra.mxu0 0
    %632 = vmatprep.subr.bf16.mxu0 0
    %633 = vmatpush2.bf16.msra.mxu0 0
    %634 = vmatprep.subr.bf16.mxu0 0
    %635 = vmatpush2.bf16.msra.mxu0 0
    %636 = vmatprep.subr.bf16.mxu0 0
    %637 = vmatpush2.bf16.msra.mxu0 0
    %638 = vmatprep.subr.bf16.mxu0 0
    %639 = vmatpush2.bf16.msra.mxu0 0
    %640 = vmatprep.subr.bf16.mxu0 0
    %641 = vmatpush2.bf16.msra.mxu0 0
    %642 = vmatprep.mubr.bf16.mxu0 0
    %643 = vmatmul.mubr.bf16.gmra.mxu0 %v608
    %v644 = vpop.f32.mrf.mxu0
    %v645 = vadd.f32 %v578, %v644
    %v646 = vpop.f32.mrf.mxu0
    %v647 = vpop.f32.mrf.mxu0
    %v648 = vpop.f32.mrf.mxu0
    %649 = vdwg.mxu0
    %v650 = vlaneseq
    %v651 = vshrl.u32 %v650, 7
    %v652 = vsub.s32 2, %v651
    %v653 = vrot.slane %v127, %v652
    %v654 = vadd.f32 %v645, %v653
    %655 = vmax.xlane.f32.xlu0 %v654
    %v656 = vpop.xlane.xlu0 %655
    %v657 = vsub.f32 %v654, %v656
    %v658 = vmul.f32 %v657, 1.442695
    %v659 = vpow.pop %v658
    %660 = vadd.xlane.f32.xlu0 %v659
    %v661 = vpop.xlane.xlu0 %660
    %v662 = vrcp.pop %v661
    %v663 = vmul.f32 %v659, %v662
    %s664 = scalar_lea.vmem [#allocation14], 16
    %665 = vst [vmem:[%s664] sm:$0xff] %v663
    // Predicated region
    $region66: #{tpu_custom_call.1} parent=1 // pred_check
      _
    $region67: #{tpu_custom_call.1} parent=1 // pred_check_branch
      %667 = sbr.rel (0) target = $region69
    $region68: #{tpu_custom_call.1} parent=1 // pred_region
      %s669 = ssub.s32 384, 384
      %670 = vsyncadd [#allocation4], %s669
      %s671 = sshll.u32 [#allocation14], 4
      %s672 = int_to_ptr.vmem [resolvable:$true] %s671
      %677 = dma.vmem_to_hbm [thread:$0]  %s672, 384, %s9, [#allocation4], 128, 128, 8
    $region69: #{tpu_custom_call.1} parent=1 // pred_fallthru
      _
    // Predicated region
    $region70: #{tpu_custom_call.1} parent=1 // pred_check
      _
    $region71: #{tpu_custom_call.1} parent=1 // pred_check_branch
      %679 = sbr.rel (0) target = $region73
    $region72: #{tpu_custom_call.1} parent=1 // pred_region
      %680 = dma.done [#allocation4], 384
    $region73: #{tpu_custom_call.1} parent=1 // pred_fallthru
      _
    %681 = vsyncpa [#allocation3], 1
    %682 = vsyncpa [#allocation6], 1
    %683 = vsyncpa [#allocation9], 1
    %684 = vsyncpa [#allocation12], 1
    %685 = vsyncpa [#allocation4], 1

</llo_original>
